<compile_context>
chip_gen: v6e
topology: v6e:2x2x1
jax: 0.10.0
libtpu: 0.0.40
codegen_flags: <defaults>
</compile_context>

<pallas_src>
import functools

import jax
import jax.numpy as jnp
from jax import lax
from jax.experimental import pallas as pl
from jax.experimental.pallas import tpu as pltpu


# ----------------------------- tiling helpers ------------------------------

def _pick_tile(dim, target, align):
    """Largest tile <= target that is a multiple of `align` and divides `dim`.
    Falls back to the full dimension (single block) if no such divisor exists
    or the dimension is already small."""
    if dim <= target:
        return dim
    t = (target // align) * align
    while t >= align:
        if dim % t == 0:
            return t
        t -= align
    return dim


# ----------------------------- Pallas kernels ------------------------------

def _dense_bias_kernel(x_ref, w_ref, b_ref, o_ref, acc_ref, *, gelu):
    """Tiled matmul with f32 accumulator; bias (+ optional GELU) epilogue."""
    k = pl.program_id(2)

    @pl.when(k == 0)
    def _():
        acc_ref[...] = jnp.zeros_like(acc_ref)

    acc_ref[...] += jnp.dot(x_ref[...], w_ref[...],
                            preferred_element_type=jnp.float32)

    @pl.when(k == pl.num_programs(2) - 1)
    def _():
        h = acc_ref[...] + b_ref[...].astype(jnp.float32)
        if gelu:
            # tanh-approx GELU (BERT "gelu_new").
            # TODO(synk): HF default is exact erf GELU; ~1e-3 difference.
            c = 0.7978845608028654
            h = 0.5 * h * (1.0 + jnp.tanh(c * (h + 0.044715 * h * h * h)))
        o_ref[...] = h.astype(o_ref.dtype)


def _dense_bias_add_ln_kernel(x_ref, w_ref, b_ref, r_ref, g_ref, bt_ref,
                              o_ref, acc_ref, *, eps):
    """Tiled matmul with bias + residual-add + LayerNorm fused into the
    K-axis finalize (N kept whole so LN reduces over the full hidden dim)."""
    k = pl.program_id(1)

    @pl.when(k == 0)
    def _():
        acc_ref[...] = jnp.zeros_like(acc_ref)

    acc_ref[...] += jnp.dot(x_ref[...], w_ref[...],
                            preferred_element_type=jnp.float32)

    @pl.when(k == pl.num_programs(1) - 1)
    def _():
        y = (acc_ref[...] + b_ref[...].astype(jnp.float32)
             + r_ref[...].astype(jnp.float32))
        mu = jnp.mean(y, axis=-1, keepdims=True)
        var = jnp.mean((y - mu) ** 2, axis=-1, keepdims=True)
        o_ref[...] = (((y - mu) * lax.rsqrt(var + eps))
                      * g_ref[...].astype(jnp.float32)
                      + bt_ref[...].astype(jnp.float32)).astype(o_ref.dtype)


def _attention_kernel(q_ref, k_ref, v_ref, m_ref, o_ref, *, scale):
    """All heads of one batch element per grid step (batched einsum)."""
    q = q_ref[0]                 # [nH, S, dh] bf16
    k = k_ref[0]                 # [nH, S, dh]
    v = v_ref[0]                 # [nH, S, dh]
    s = jnp.einsum('hqd,hkd->hqk', q, k,
                   preferred_element_type=jnp.float32) * scale
    s = s + m_ref[...].astype(jnp.float32)          # [1,1,S] broadcast
    s = s - jnp.max(s, axis=-1, keepdims=True)
    p = jnp.exp(s)
    p = p * pl.reciprocal(jnp.sum(p, axis=-1, keepdims=True), approx=True)
    ctx = jnp.einsum('hqk,hkd->hqd', p.astype(v.dtype), v,
                     preferred_element_type=jnp.float32)
    o_ref[0] = ctx.astype(o_ref.dtype)


# ----------------------------- kernel wrappers ------------------------------

# Tile targets: bf16 buffers, double-buffered, comfortably within the 64 MiB
# v7x VMEM budget (and trivially within v5e/v6e 128 MiB).
_TM_TARGET = 256
_TN_TARGET = 512
_TK_TARGET = 512


def dense_bias(x, w, b, *, gelu=False, out_dtype=jnp.bfloat16):
    M, K = x.shape
    _, N = w.shape
    tm = _pick_tile(M, _TM_TARGET, 8)
    tn = _pick_tile(N, _TN_TARGET, 128)
    tk = _pick_tile(K, _TK_TARGET, 128)
    grid = (M // tm, N // tn, K // tk)
    return pl.pallas_call(
        functools.partial(_dense_bias_kernel, gelu=gelu),
        grid=grid,
        in_specs=[
            pl.BlockSpec((tm, tk), lambda i, j, k: (i, k)),
            pl.BlockSpec((tk, tn), lambda i, j, k: (k, j)),
            pl.BlockSpec((1, tn), lambda i, j, k: (0, j)),
        ],
        out_specs=pl.BlockSpec((tm, tn), lambda i, j, k: (i, j)),
        out_shape=jax.ShapeDtypeStruct((M, N), out_dtype),
        scratch_shapes=[pltpu.VMEM((tm, tn), jnp.float32)],
        compiler_params=pltpu.CompilerParams(
            dimension_semantics=("parallel", "parallel", "arbitrary")),
    )(x, w, b.reshape(1, N))


def dense_bias_add_ln(x, w, b, residual, gamma, beta, *, eps=1e-12,
                      out_dtype=jnp.bfloat16):
    M, K = x.shape
    _, N = w.shape
    tm = _pick_tile(M, _TM_TARGET, 8)
    tk = _pick_tile(K, _TK_TARGET, 128)
    grid = (M // tm, K // tk)
    return pl.pallas_call(
        functools.partial(_dense_bias_add_ln_kernel, eps=eps),
        grid=grid,
        in_specs=[
            pl.BlockSpec((tm, tk), lambda i, k: (i, k)),
            pl.BlockSpec((tk, N), lambda i, k: (k, 0)),
            pl.BlockSpec((1, N), lambda i, k: (0, 0)),
            pl.BlockSpec((tm, N), lambda i, k: (i, 0)),
            pl.BlockSpec((1, N), lambda i, k: (0, 0)),
            pl.BlockSpec((1, N), lambda i, k: (0, 0)),
        ],
        out_specs=pl.BlockSpec((tm, N), lambda i, k: (i, 0)),
        out_shape=jax.ShapeDtypeStruct((M, N), out_dtype),
        scratch_shapes=[pltpu.VMEM((tm, N), jnp.float32)],
        compiler_params=pltpu.CompilerParams(
            dimension_semantics=("parallel", "arbitrary")),
    )(x, w, b.reshape(1, N), residual,
      gamma.reshape(1, N), beta.reshape(1, N))


def attention(q, k, v, mask_add):
    B, nH, S, dh = q.shape
    scale = 1.0 / (dh ** 0.5)
    qkv_spec = pl.BlockSpec((1, nH, S, dh), lambda b: (b, 0, 0, 0))
    return pl.pallas_call(
        functools.partial(_attention_kernel, scale=scale),
        grid=(B,),
        in_specs=[qkv_spec, qkv_spec, qkv_spec,
                  pl.BlockSpec((1, 1, S), lambda b: (b, 0, 0))],
        out_specs=qkv_spec,
        out_shape=jax.ShapeDtypeStruct((B, nH, S, dh), q.dtype),
        compiler_params=pltpu.CompilerParams(
            dimension_semantics=("parallel",)),
    )(q, k, v, mask_add)
    # TODO(synk): for long S, switch to flash-style KV tiling (online softmax)
    # so the S x S score buffer never materializes in VMEM.


# ----------------------------- model pieces --------------------------------

def bert_layer(p, x, mask_add, num_heads):
    B, S, H = x.shape
    dh = H // num_heads
    xf = x.reshape(B * S, H).astype(jnp.bfloat16)

    # Fused QKV projection: one tiled matmul with N = 3H.
    wqkv = jnp.concatenate([p["wq"], p["wk"], p["wv"]], axis=1
                           ).astype(jnp.bfloat16)
    bqkv = jnp.concatenate([p["bq"], p["bk"], p["bv"]], axis=0)
    qkv = dense_bias(xf, wqkv, bqkv)                      # [B*S, 3H] bf16

    # Split heads: free reshape + one XLA transpose to [3, B, nH, S, dh].
    qkv = qkv.reshape(B, S, 3, num_heads, dh).transpose(2, 0, 3, 1, 4)
    q, k, v = qkv[0], qkv[1], qkv[2]                      # [B, nH, S, dh]

    ctx = attention(q, k, v, mask_add)                    # [B, nH, S, dh]
    ctx = ctx.transpose(0, 2, 1, 3).reshape(B * S, H)

    # Attention output projection + residual + LayerNorm fused.
    h1 = dense_bias_add_ln(ctx, p["wo"].astype(jnp.bfloat16), p["bo"],
                           xf, p["ln1_g"], p["ln1_b"])

    # FFN: intermediate (GELU fused) then output projection + residual + LN.
    inter = dense_bias(h1, p["wi"].astype(jnp.bfloat16), p["bi"], gelu=True)
    h2 = dense_bias_add_ln(inter, p["wo2"].astype(jnp.bfloat16), p["bo2"],
                           h1, p["ln2_g"], p["ln2_b"])
    return h2.reshape(B, S, H)


def crf_log_likelihood(crf, emissions, tags):
    """Standard linear-chain CRF log-likelihood, sum-reduced over batch.

    emissions: [T, Bc, L] float32, tags: [T, Bc] int32.
    # TODO(synk): reference CRF class source not provided; this implements the
    # usual torchcrf-style log-likelihood (plain JAX via lax.scan). Note the
    # caller feeds emissions via a reshape (not transpose), mirroring the
    # PyTorch .view(100, -1, L); padding mask is ignored, as in the reference.
    """
    start, end, trans = crf["start"], crf["end"], crf["trans"]

    # numerator: score of the gold path
    first = start[tags[0]] + jnp.take_along_axis(
        emissions[0], tags[0][:, None], axis=1)[:, 0]

    def num_step(carry, inp):
        prev_tag, score = carry
        em_t, tag_t = inp
        score = (score + trans[prev_tag, tag_t]
                 + jnp.take_along_axis(em_t, tag_t[:, None], axis=1)[:, 0])
        return (tag_t, score), None

    (last_tag, num), _ = lax.scan(num_step, (tags[0], first),
                                  (emissions[1:], tags[1:]))
    num = num + end[last_tag]

    # denominator: log partition via forward algorithm
    alpha0 = start[None, :] + emissions[0]

    def den_step(alpha, em_t):
        nxt = jax.nn.logsumexp(
            alpha[:, :, None] + trans[None, :, :] + em_t[:, None, :], axis=1)
        return nxt, None

    alpha, _ = lax.scan(den_step, alpha0, emissions[1:])
    log_z = jax.nn.logsumexp(alpha + end[None, :], axis=1)
    return jnp.sum(num - log_z)


def psum_forward(params, layers, attention_mask, labels, *,
                 count, num_labels, num_heads):
    B, S, H = layers[0].shape
    mask_add = ((1.0 - attention_mask.astype(jnp.float32))
                * -10000.0).reshape(B, 1, S)

    clf_w = params["clf_w"]
    clf_b = params["clf_b"]

    losses = []
    logitses = []
    for i in range(count):
        layer = bert_layer(params["pre"][i], layers[-i - 1], mask_add,
                           num_heads)
        # self.dropout is identity at inference time (eval mode).
        # Classifier: N=num_labels=5 is tiny and not lane-dense -> plain XLA.
        logits = (layer.reshape(B * S, H).astype(jnp.float32) @ clf_w
                  + clf_b).reshape(B, S, num_labels)
        if labels is not None:
            # torch: logits.view(100, -1, L) / labels.view(100, -1);
            # here S plays the role of the hard-coded 100 (pure view/reshape).
            em = logits.reshape(S, -1, num_labels)
            tg = labels.reshape(S, -1)
            losses.append(crf_log_likelihood(params["crf"][i], em, tg))
        logitses.append(logits)

    if labels is not None:
        total_loss = jnp.sum(jnp.stack(losses), axis=0)
    else:
        total_loss = jnp.zeros(())
    avg_logits = jnp.sum(jnp.stack(logitses), axis=0) / count
    return -total_loss, avg_logits


# ----------------------------- parameter init ------------------------------

def init_params(key, *, count, hidden, intermediate, num_labels):
    def normal(k, shape, scale=0.02):
        return scale * jax.random.normal(k, shape, dtype=jnp.float32)

    keys = iter(jax.random.split(key, 64))
    pre = []
    crf = []
    for _ in range(count):
        pre.append(dict(
            wq=normal(next(keys), (hidden, hidden)), bq=jnp.zeros(hidden),
            wk=normal(next(keys), (hidden, hidden)), bk=jnp.zeros(hidden),
            wv=normal(next(keys), (hidden, hidden)), bv=jnp.zeros(hidden),
            wo=normal(next(keys), (hidden, hidden)), bo=jnp.zeros(hidden),
            ln1_g=jnp.ones(hidden), ln1_b=jnp.zeros(hidden),
            wi=normal(next(keys), (hidden, intermediate)),
            bi=jnp.zeros(intermediate),
            wo2=normal(next(keys), (intermediate, hidden)),
            bo2=jnp.zeros(hidden),
            ln2_g=jnp.ones(hidden), ln2_b=jnp.zeros(hidden),
        ))
        crf.append(dict(
            trans=normal(next(keys), (num_labels, num_labels), 0.1),
            start=normal(next(keys), (num_labels,), 0.1),
            end=normal(next(keys), (num_labels,), 0.1),
        ))
    params = dict(
        pre=pre, crf=crf,
        clf_w=normal(next(keys), (hidden, num_labels)),
        clf_b=jnp.zeros(num_labels),
    )
    return params


# ----------------------------------- main -----------------------------------

if __name__ == "__main__":
    COUNT = 2          # PSUM heads
    NUM_LABELS = 5
    B, S, H = 2, 8, 32
    NUM_HEADS = 2
    INTERMEDIATE = 64
    NUM_HIDDEN_STATES = COUNT + 1   # "layers" list fed to PSUM.forward

    key = jax.random.PRNGKey(0)
    k_par, k_lay, k_lab = jax.random.split(key, 3)

    params = init_params(k_par, count=COUNT, hidden=H,
                         intermediate=INTERMEDIATE, num_labels=NUM_LABELS)

    layer_keys = jax.random.split(k_lay, NUM_HIDDEN_STATES)
    layers = [jax.random.normal(k, (B, S, H), dtype=jnp.float32)
              for k in layer_keys]

    attention_mask = jnp.ones((B, S), dtype=jnp.float32
                              ).at[:, S - 2:].set(0.0)   # pad last 2 tokens
    labels = jax.random.randint(k_lab, (B, S), 0, NUM_LABELS, dtype=jnp.int32)

    neg_total_loss, avg_logits = psum_forward(
        params, layers, attention_mask, labels,
        count=COUNT, num_labels=NUM_LABELS, num_heads=NUM_HEADS)

    jax.block_until_ready((neg_total_loss, avg_logits))
    assert avg_logits.shape == (B, S, NUM_LABELS)
    assert jnp.isfinite(neg_total_loss)
    print("KERNEL_OK")
</pallas_src>

<mosaic_0001>
module attributes {stable_mosaic.version = 11 : i64} {
  func.func @_dense_bias_kernel(%arg0: i32, %arg1: i32, %arg2: i32, %arg3: memref<16x32xbf16, #tpu.memory_space<vmem>>, %arg4: memref<32x96xbf16, #tpu.memory_space<vmem>>, %arg5: memref<1x96xf32, #tpu.memory_space<vmem>>, %arg6: memref<16x96xbf16, #tpu.memory_space<vmem>>, %arg7: memref<16x96xf32, #tpu.memory_space<vmem>>) attributes {dimension_semantics = [#tpu.dimension_semantics<parallel>, #tpu.dimension_semantics<parallel>, #tpu.dimension_semantics<arbitrary>], iteration_bounds = array<i64: 1, 1, 1>, scalar_prefetch = 0 : i64, scratch_operands = 1 : i64, tpu.core_type = #tpu.core_type<tc>, window_params = [{transform_indices = @transform_0, window_bounds = array<i64: 16, 32>}, {transform_indices = @transform_1, window_bounds = array<i64: 32, 96>}, {transform_indices = @transform_2, window_bounds = array<i64: 1, 96>}, {transform_indices = @transform_3, window_bounds = array<i64: 16, 96>}]} {
    %c0_i32 = arith.constant 0 : i32
    %0 = arith.cmpi eq, %arg2, %c0_i32 : i32
    %1 = arith.extui %0 : i1 to i32
    %c0_i32_0 = arith.constant 0 : i32
    %2 = arith.cmpi ne, %1, %c0_i32_0 : i32
    scf.if %2 {
      %cst_10 = arith.constant 0.000000e+00 : f32
      %12 = vector.broadcast %cst_10 : f32 to vector<16x96xf32>
      %c0_11 = arith.constant 0 : index
      %c0_12 = arith.constant 0 : index
      %13 = vector.load %arg7[%c0_11, %c0_12] : memref<16x96xf32, #tpu.memory_space<vmem>>, vector<16x96xf32>
      tpu.vector_store %arg7[%c0_11, %c0_12], %12 {strides = array<i32>} : memref<16x96xf32, #tpu.memory_space<vmem>>, vector<16x96xf32>,
    } else {
    }
    %c0 = arith.constant 0 : index
    %c0_1 = arith.constant 0 : index
    %3 = vector.load %arg7[%c0, %c0_1] : memref<16x96xf32, #tpu.memory_space<vmem>>, vector<16x96xf32>
    %c0_2 = arith.constant 0 : index
    %c0_3 = arith.constant 0 : index
    %4 = vector.load %arg3[%c0_2, %c0_3] : memref<16x32xbf16, #tpu.memory_space<vmem>>, vector<16x32xbf16>
    %c0_4 = arith.constant 0 : index
    %c0_5 = arith.constant 0 : index
    %5 = vector.load %arg4[%c0_4, %c0_5] : memref<32x96xbf16, #tpu.memory_space<vmem>>, vector<32x96xbf16>
    %cst = arith.constant dense<0.000000e+00> : vector<16x96xf32>
    %6 = tpu.matmul %4, %5, %cst {dimension_numbers = #tpu.dot_dimension_numbers<[1], [0], [0], [1], [0, 0, 1, 1], [], []>} : vector<16x32xbf16>, vector<32x96xbf16>, vector<16x96xf32> -> vector<16x96xf32>
    %7 = arith.addf %3, %6 : vector<16x96xf32>
    %c0_6 = arith.constant 0 : index
    %c0_7 = arith.constant 0 : index
    %8 = vector.load %arg7[%c0_6, %c0_7] : memref<16x96xf32, #tpu.memory_space<vmem>>, vector<16x96xf32>
    tpu.vector_store %arg7[%c0_6, %c0_7], %7 {strides = array<i32>} : memref<16x96xf32, #tpu.memory_space<vmem>>, vector<16x96xf32>,
    %c0_i32_8 = arith.constant 0 : i32
    %9 = arith.cmpi eq, %arg2, %c0_i32_8 : i32
    %10 = arith.extui %9 : i1 to i32
    %c0_i32_9 = arith.constant 0 : i32
    %11 = arith.cmpi ne, %10, %c0_i32_9 : i32
    scf.if %11 {
      %c0_10 = arith.constant 0 : index
      %c0_11 = arith.constant 0 : index
      %12 = vector.load %arg7[%c0_10, %c0_11] : memref<16x96xf32, #tpu.memory_space<vmem>>, vector<16x96xf32>
      %c0_12 = arith.constant 0 : index
      %c0_13 = arith.constant 0 : index
      %13 = vector.load %arg5[%c0_12, %c0_13] : memref<1x96xf32, #tpu.memory_space<vmem>>, vector<1x96xf32>
      %14 = vector.broadcast %13 : vector<1x96xf32> to vector<16x96xf32>
      %15 = arith.addf %12, %14 : vector<16x96xf32>
      %16 = arith.truncf %15 : vector<16x96xf32> to vector<16x96xbf16>
      %c0_14 = arith.constant 0 : index
      %c0_15 = arith.constant 0 : index
      %17 = vector.load %arg6[%c0_14, %c0_15] : memref<16x96xbf16, #tpu.memory_space<vmem>>, vector<16x96xbf16>
      tpu.vector_store %arg6[%c0_14, %c0_15], %16 {strides = array<i32>} : memref<16x96xbf16, #tpu.memory_space<vmem>>, vector<16x96xbf16>,
    } else {
    }
    return
  }
  func.func @transform_0(%arg0: i32, %arg1: i32, %arg2: i32) -> (i32, i32) {
    %c0_i32 = arith.constant 0 : i32
    return %arg0, %arg2 : i32, i32
  }
  func.func @transform_1(%arg0: i32, %arg1: i32, %arg2: i32) -> (i32, i32) {
    %c0_i32 = arith.constant 0 : i32
    return %arg2, %arg1 : i32, i32
  }
  func.func @transform_2(%arg0: i32, %arg1: i32, %arg2: i32) -> (i32, i32) {
    %c0_i32 = arith.constant 0 : i32
    %c0_i32_0 = arith.constant 0 : i32
    return %c0_i32, %arg1 : i32, i32
  }
  func.func @transform_3(%arg0: i32, %arg1: i32, %arg2: i32) -> (i32, i32) {
    %c0_i32 = arith.constant 0 : i32
    return %arg0, %arg1 : i32, i32
  }
}

</mosaic_0001>

<llo_original>
// kernel: tpu_custom_call.1
$region0: #{tpu_custom_call.1}
  #allocation0 [shape = 'u32[]', space=smem, size = 0x4, offset = 0x4, fixed_abs, tag = 'smem constant byte address 0x4 - core index']
  #allocation1 [shape = 'u32[144,128]{1,0:T(1,128)}', space=vmem, size = 0x12000, scoped, tag = 'internal scratch']
  #allocation2 [shape = 'f32[16,96]{1,0:T(8,128)}', space=vmem, size = 0x2000, scoped, tag = 'scratch operand']
  %s0 = inlined_call_operand.hbm [shape: bf16[16,32], index: 0, kind: input, shape index: {}]
  %s1 = inlined_call_operand.hbm [shape: bf16[32,96], index: 1, kind: input, shape index: {}]
  %s2 = inlined_call_operand.vmem [shape: f32[1,96], index: 2, kind: input, shape index: {}]
  %s3 = inlined_call_operand.hbm [shape: bf16[16,96], index: 3, kind: output, shape index: {}]
  %s4 = sld [smem:[#allocation0]]
  $region38: #{tpu_custom_call.1} parent=0
    _
  %s6 = ssub.s32 1, %s4
  %s7 = scalar_select 0, %s6, %s4
  $region1: #{tpu_custom_call.1} parent=0
    #allocation3 [shape = 'u8[4096]{0}', space=vmem, size = 0x1000, scoped, tag = 'input window, operand 0, single buffered']
    #allocation4 [shape = 's32[1]{0}', space=sflag, size = 0x4, scoped, tag = 'scoped memory for tpu_custom_call.1']
    #allocation5 [shape = 's32[1]{0}', space=sflag, size = 0x4, scoped, tag = 'scoped memory for tpu_custom_call.1']
    #allocation6 [shape = 'u8[8192]{0}', space=vmem, size = 0x2000, scoped, tag = 'input window, operand 1, single buffered']
    #allocation7 [shape = 's32[1]{0}', space=sflag, size = 0x4, scoped, tag = 'scoped memory for tpu_custom_call.1']
    #allocation8 [shape = 'u8[4096]{0}', space=vmem, size = 0x1000, scoped, tag = 'output window, operand 0, single buffered']
    %8 = vsyncpa [#allocation4], 0
    %9 = vsyncpa [#allocation7], 0
    %10 = vsyncpa [#allocation5], 0
    // Predicated region
    $region2: #{tpu_custom_call.1} parent=1 // pred_check
      _
    $region3: #{tpu_custom_call.1} parent=1 // pred_check_branch
      %12 = sbr.rel (0) target = $region5
    $region4: #{tpu_custom_call.1} parent=1 // pred_region
      %s14 = ssub.s32 128, 128
      %15 = vsyncadd [#allocation4], %s14
      %s16 = sshll.u32 [#allocation3], 4
      %s17 = int_to_ptr.vmem [resolvable:$true] %s16
      %22 = dma.hbm_to_vmem [thread:$0]  %s0, 128, %s17, [#allocation4], 64, 64, 4
    $region5: #{tpu_custom_call.1} parent=1 // pred_fallthru
      _
    // Predicated region
    $region6: #{tpu_custom_call.1} parent=1 // pred_check
      _
    $region7: #{tpu_custom_call.1} parent=1 // pred_check_branch
      %24 = sbr.rel (0) target = $region9
    $region8: #{tpu_custom_call.1} parent=1 // pred_region
      %s26 = ssub.s32 256, 256
      %27 = vsyncadd [#allocation7], %s26
      %s28 = sshll.u32 [#allocation6], 4
      %s29 = int_to_ptr.vmem [resolvable:$true] %s28
      %34 = dma.hbm_to_vmem [thread:$0]  %s1, 256, %s29, [#allocation7], 64, 64, 4
    $region9: #{tpu_custom_call.1} parent=1 // pred_fallthru
      _
    // Predicated region
    $region10: #{tpu_custom_call.1} parent=1 // pred_check
      _
    $region11: #{tpu_custom_call.1} parent=1 // pred_check_branch
      %36 = sbr.rel (0) target = $region13
    $region12: #{tpu_custom_call.1} parent=1 // pred_region
      _
    $region13: #{tpu_custom_call.1} parent=1 // pred_fallthru
      _
    // Predicated region
    $region14: #{tpu_custom_call.1} parent=1 // pred_check
      _
    $region15: #{tpu_custom_call.1} parent=1 // pred_check_branch
      %38 = sbr.rel (0) target = $region17
    $region16: #{tpu_custom_call.1} parent=1 // pred_region
      %39 = dma.done [#allocation4], 128
    $region17: #{tpu_custom_call.1} parent=1 // pred_fallthru
      _
    // Predicated region
    $region18: #{tpu_custom_call.1} parent=1 // pred_check
      _
    $region19: #{tpu_custom_call.1} parent=1 // pred_check_branch
      %41 = sbr.rel (0) target = $region21
    $region20: #{tpu_custom_call.1} parent=1 // pred_region
      %42 = dma.done [#allocation7], 256
    $region21: #{tpu_custom_call.1} parent=1 // pred_fallthru
      _
    %p44 = scmp.eq.s32.totalorder 0, 0
    // Predicated region
    $region22: #{tpu_custom_call.1} parent=1 // pred_check
      %p45 = pneg %p44
    $region23: #{tpu_custom_call.1} parent=1 // pred_check_branch
      %47 = sbr.rel (%p45) target = $region25
    $region24: #{tpu_custom_call.1} parent=1 // pred_region
      %vm48 = vcmask 785408
      %49 = vst.msk [vmem:[#allocation2] sm:$0xff] %vm48, 0.0
      %50 = vst.msk [vmem:[#allocation2 + $0x8] sm:$0xff] %vm48, 0.0
    $region25: #{tpu_custom_call.1} parent=1 // pred_fallthru
      _
    %v51 = vld [vmem:[#allocation2] sm:$0xff]
    %v52 = vld [vmem:[#allocation2 + $0x8] sm:$0xff]
    %v53 = vld [vmem:[#allocation3] sm:$0xf]
    %v54 = vld [vmem:[#allocation3 + $0x4] sm:$0xf]
    %v55 = vld [vmem:[#allocation6] sm:$0xf]
    %v56 = vld [vmem:[#allocation6 + $0x4] sm:$0xf]
    %v57 = vld [vmem:[#allocation6 + $0x8] sm:$0xf]
    %v58 = vld [vmem:[#allocation6 + $0xc] sm:$0xf]
    %v61 = vunpack.c.l.b16 %v53
    %v62 = vunpack.c.l.b16 %v54
    %v63 = vpack.c.b16 %v62, %v61
    %v68 = vunpack.c.l.b16 %v55
    %v69 = vunpack.c.l.b16 %v56
    %v70 = vunpack.c.l.b16 %v57
    %v71 = vunpack.c.l.b16 %v58
    %v72 = vpack.c.b16 %v69, %v68
    %v73 = vpack.c.b16 %v71, %v70
    %vm76 = vcmask 261120
    %v78 = vsel %vm76, %v63, 0
    %80 = vmatprep.subr.bf16.mxu0 0
    %81 = vmatpush1.bf16.msra.mxu0 0
    %82 = vmatprep.subr.bf16.mxu0 0
    %83 = vmatpush1.bf16.msra.mxu0 0
    %84 = vmatprep.subr.bf16.mxu0 0
    %85 = vmatpush1.bf16.msra.mxu0 0
    %86 = vmatprep.subr.bf16.mxu0 0
    %87 = vmatpush1.bf16.msra.mxu0 0
    %88 = vmatprep.subr.bf16.mxu0 0
    %89 = vmatpush1.bf16.msra.mxu0 0
    %90 = vmatprep.subr.bf16.mxu0 0
    %91 = vmatpush1.bf16.msra.mxu0 0
    %92 = vmatprep.subr.bf16.mxu0 0
    %93 = vmatpush1.bf16.msra.mxu0 %v73
    %94 = vmatprep.subr.bf16.mxu0 0
    %95 = vmatpush1.bf16.msra.mxu0 %v72
    %96 = vmatprep.subr.bf16.mxu0 0
    %97 = vmatpush2.bf16.msra.mxu0 0
    %98 = vmatprep.subr.bf16.mxu0 0
    %99 = vmatpush2.bf16.msra.mxu0 0
    %100 = vmatprep.subr.bf16.mxu0 0
    %101 = vmatpush2.bf16.msra.mxu0 0
    %102 = vmatprep.subr.bf16.mxu0 0
    %103 = vmatpush2.bf16.msra.mxu0 0
    %104 = vmatprep.subr.bf16.mxu0 0
    %105 = vmatpush2.bf16.msra.mxu0 0
    %106 = vmatprep.subr.bf16.mxu0 0
    %107 = vmatpush2.bf16.msra.mxu0 0
    %108 = vmatprep.subr.bf16.mxu0 0
    %109 = vmatpush2.bf16.msra.mxu0 0
    %110 = vmatprep.subr.bf16.mxu0 0
    %111 = vmatpush2.bf16.msra.mxu0 0
    %112 = vmatprep.mubr.bf16.mxu0 0
    %113 = vmatmul.mubr.bf16.gmra.mxu0 %v78
    %v114 = vpop.f32.mrf.mxu0
    %v115 = vadd.f32 0.0, %v114
    %v116 = vpop.f32.mrf.mxu0
    %v117 = vpop.f32.mrf.mxu0
    %v118 = vadd.f32 0.0, %v117
    %v119 = vpop.f32.mrf.mxu0
    %120 = vdwg.mxu0
    %v121 = vadd.f32 %v51, %v115
    %v122 = vadd.f32 %v52, %v118
    %vm123 = vcmask 785408
    %124 = vst.msk [vmem:[#allocation2] sm:$0xff] %vm123, %v121
    %125 = vst.msk [vmem:[#allocation2 + $0x8] sm:$0xff] %vm123, %v122
    // Predicated region
    $region26: #{tpu_custom_call.1} parent=1 // pred_check
      %p126 = pneg %p44
    $region27: #{tpu_custom_call.1} parent=1 // pred_check_branch
      %128 = sbr.rel (%p126) target = $region29
    $region28: #{tpu_custom_call.1} parent=1 // pred_region
      %v129 = vld [vmem:[#allocation2] sm:$0xff]
      %v130 = vld [vmem:[#allocation2 + $0x8] sm:$0xff]
      %v131 = vld [vmem:[%s2] sm:$0x1]
      %v133 = vlaneseq
      %v134 = vshrl.u32 %v133, 7
      %v135 = vsub.s32 0, %v134
      %v136 = vrot.slane %v131, %v135
      %v138 = vadd.f32 %v129, %v136
      %v139 = vadd.f32 %v130, %v136
      %v140 = vpack.c.bf16 %v139, %v138
      %v142 = vunpack.c.l.b16 %v140
      %v143 = vunpack.c.h.b16 %v140
      %v144 = vpack.c.b16 %v142, %v142
      %v145 = vpack.c.b16 %v143, %v143
      %vm148 = vcmask 781312
      %149 = vst.msk [vmem:[#allocation8] sm:$0xf] %vm148, %v144
      %150 = vst.msk [vmem:[#allocation8 + $0x4] sm:$0xf] %vm148, %v145
    $region29: #{tpu_custom_call.1} parent=1 // pred_fallthru
      _
    // Predicated region
    $region30: #{tpu_custom_call.1} parent=1 // pred_check
      _
    $region31: #{tpu_custom_call.1} parent=1 // pred_check_branch
      %152 = sbr.rel (0) target = $region33
    $region32: #{tpu_custom_call.1} parent=1 // pred_region
      %s154 = ssub.s32 128, 128
      %155 = vsyncadd [#allocation5], %s154
      %s156 = sshll.u32 [#allocation8], 4
      %s157 = int_to_ptr.vmem [resolvable:$true] %s156
      %162 = dma.vmem_to_hbm [thread:$0]  %s157, 128, %s3, [#allocation5], 64, 64, 4
    $region33: #{tpu_custom_call.1} parent=1 // pred_fallthru
      _
    // Predicated region
    $region34: #{tpu_custom_call.1} parent=1 // pred_check
      _
    $region35: #{tpu_custom_call.1} parent=1 // pred_check_branch
      %164 = sbr.rel (0) target = $region37
    $region36: #{tpu_custom_call.1} parent=1 // pred_region
      %165 = dma.done [#allocation5], 128
    $region37: #{tpu_custom_call.1} parent=1 // pred_fallthru
      _
    %166 = vsyncpa [#allocation4], 1
    %167 = vsyncpa [#allocation7], 1
    %168 = vsyncpa [#allocation5], 1

</llo_original>
